<compile_context>
chip_gen: v6e
topology: v6e:2x2x1
jax: 0.10.0
libtpu: 0.0.40
codegen_flags: <defaults>
</compile_context>

<pallas_src>
import functools

import jax
import jax.numpy as jnp
from jax.experimental import pallas as pl
from jax.experimental.pallas import tpu as pltpu


HIDDEN = 128
# Default batch-tile: safe for v7x's 64 MiB VMEM (per-tile working set ~2-3 MB
# incl. double buffering); sweep upward (4-8K rows) on v5e/v6e if desired.
DEFAULT_BLOCK_B = 2048


def _round_up(n, m):
    return ((n + m - 1) // m) * m


def _softplus(x):
    # matches torch.nn.Softplus(beta=1, threshold=20); exp overflow in the
    # untaken branch is discarded by the select (no NaN possible).
    return jnp.where(x > 20.0, x, jnp.log1p(jnp.exp(x)))


def _noise_estimator_kernel(
    t_ref,                              # SMEM (1,1): t / T
    x_ref, y_ref, f_ref,                # VMEM (TB, Dx), (TB, Dy), (TB, Dy)
    w1x_ref, w1y_ref, w1f_ref, b1_ref, wt1_ref, bt1_ref,
    w2_ref, b2_ref, wt2_ref, bt2_ref,
    w3_ref, b3_ref, wt3_ref, bt3_ref,
    w4_ref, b4_ref,
    out_ref,                            # VMEM (TB, Dout)
):
    t = t_ref[0, 0]

    # ---- layer 1: softplus((cat(x,y,f) @ W1 + b1) * g1) with the t-gate g1
    # folded into the (split) weights and bias (g1 is per output column).
    g1 = wt1_ref[...] * t + bt1_ref[...]                       # (1, HIDDEN)
    h = jnp.dot(x_ref[...], w1x_ref[...] * g1, preferred_element_type=jnp.float32)
    h += jnp.dot(y_ref[...], w1y_ref[...] * g1, preferred_element_type=jnp.float32)
    h += jnp.dot(f_ref[...], w1f_ref[...] * g1, preferred_element_type=jnp.float32)
    h = _softplus(h + b1_ref[...] * g1)

    # ---- layer 2
    g2 = wt2_ref[...] * t + bt2_ref[...]
    h = jnp.dot(h, w2_ref[...] * g2, preferred_element_type=jnp.float32)
    h = _softplus(h + b2_ref[...] * g2)

    # ---- layer 3
    g3 = wt3_ref[...] * t + bt3_ref[...]
    h = jnp.dot(h, w3_ref[...] * g3, preferred_element_type=jnp.float32)
    h = _softplus(h + b3_ref[...] * g3)

    # ---- output layer g_4
    out = jnp.dot(h, w4_ref[...], preferred_element_type=jnp.float32) + b4_ref[...]
    out_ref[...] = out.astype(out_ref.dtype)


@functools.partial(jax.jit, static_argnames=("T", "block_b"))
def noise_estimator_forward(params, x, y, f_x, t, *, T, block_b=DEFAULT_BLOCK_B):
    # --- glue: squeeze trailing singleton dims of y / f_x to match x's rank ---
    while y.ndim > x.ndim:
        y = jnp.squeeze(y, axis=-1)
        f_x = jnp.squeeze(f_x, axis=-1)

    x = x.astype(jnp.float32)
    y = y.astype(jnp.float32)
    f_x = f_x.astype(jnp.float32)
    t_norm = (t.astype(jnp.float32) / float(T)).reshape(1, 1)

    B, Dx = x.shape
    Dy = y.shape[1]
    out_size = params["w4"].shape[1]

    # Batch tile: multiple of 8 sublanes, capped by block_b; pad B if needed so
    # the last tile never reads/writes out of range.
    tb = min(block_b, _round_up(B, 8))
    Bp = _round_up(B, tb)
    if Bp != B:
        pad = Bp - B
        x = jnp.pad(x, ((0, pad), (0, 0)))
        y = jnp.pad(y, ((0, pad), (0, 0)))
        f_x = jnp.pad(f_x, ((0, pad), (0, 0)))

    # Split W1 once (cheap, static) so the kernel never needs a concat of the
    # inputs and never slices across sublane boundaries in VMEM.
    w1 = params["w1"]
    w1x, w1y, w1f = w1[:Dx], w1[Dx:Dx + Dy], w1[Dx + Dy:]

    weights = (
        w1x, w1y, w1f, params["b1"], params["wt1"], params["bt1"],
        params["w2"], params["b2"], params["wt2"], params["bt2"],
        params["w3"], params["b3"], params["wt3"], params["bt3"],
        params["w4"], params["b4"],
    )

    vmem = pltpu.MemorySpace.VMEM
    smem = pltpu.MemorySpace.SMEM
    rows = lambda i: (i, 0)     # batch-tiled arrays
    rep = lambda i: (0, 0)      # resident (weights / scalar): same block each step

    in_specs = (
        [pl.BlockSpec((1, 1), rep, memory_space=smem),
         pl.BlockSpec((tb, Dx), rows, memory_space=vmem),
         pl.BlockSpec((tb, Dy), rows, memory_space=vmem),
         pl.BlockSpec((tb, Dy), rows, memory_space=vmem)]
        + [pl.BlockSpec(w.shape, rep, memory_space=vmem) for w in weights]
    )

    res = pl.pallas_call(
        _noise_estimator_kernel,
        out_shape=jax.ShapeDtypeStruct((Bp, out_size), jnp.float32),
        grid=(Bp // tb,),
        in_specs=in_specs,
        out_specs=pl.BlockSpec((tb, out_size), rows, memory_space=vmem),
        compiler_params=pltpu.CompilerParams(
            dimension_semantics=("parallel",)),
    )(t_norm, x, y, f_x, *weights)

    if Bp != B:
        res = res[:B]
    # PyTorch: if res.shape[-1] != 1 -> unsqueeze(-1)
    if out_size != 1:
        res = res[..., None]
    return res


def init_params(key, input_size, output_size):
    """Deterministic init matching nn.Linear shapes (stored transposed: (in, out))."""
    din = input_size + 2 * output_size

    def linear(key, fan_in, fan_out):
        kw, kb = jax.random.split(key)
        bound = 1.0 / jnp.sqrt(float(fan_in))
        w = jax.random.uniform(kw, (fan_in, fan_out), jnp.float32, -bound, bound)
        b = jax.random.uniform(kb, (1, fan_out), jnp.float32, -bound, bound)
        return w, b

    keys = jax.random.split(key, 7)
    params = {}
    params["w1"], params["b1"] = linear(keys[0], din, HIDDEN)
    params["wt1"], params["bt1"] = linear(keys[1], 1, HIDDEN)   # g_1b: Linear(1,128)
    params["w2"], params["b2"] = linear(keys[2], HIDDEN, HIDDEN)
    params["wt2"], params["bt2"] = linear(keys[3], 1, HIDDEN)   # g_2b
    params["w3"], params["b3"] = linear(keys[4], HIDDEN, HIDDEN)
    params["wt3"], params["bt3"] = linear(keys[5], 1, HIDDEN)   # g_3b
    params["w4"], params["b4"] = linear(keys[6], HIDDEN, output_size)
    params["wt1"] = params["wt1"].reshape(1, HIDDEN)
    params["wt2"] = params["wt2"].reshape(1, HIDDEN)
    params["wt3"] = params["wt3"].reshape(1, HIDDEN)
    return params


def _reference_forward(params, x, y, f_x, t, T):
    """Plain-JAX replica of the PyTorch forward, for correctness checking."""
    while y.ndim > x.ndim:
        y = jnp.squeeze(y, -1)
        f_x = jnp.squeeze(f_x, -1)
    tn = (t.astype(jnp.float32) / float(T)).reshape(1, 1)
    h = jnp.concatenate((x, y, f_x), axis=1)
    for i in (1, 2, 3):
        h = h @ params[f"w{i}"] + params[f"b{i}"]
        gate = tn * params[f"wt{i}"] + params[f"bt{i}"]
        h = jax.nn.softplus(h * gate)
    out = h @ params["w4"] + params["b4"]
    if out.shape[-1] != 1:
        out = out[..., None]
    return out


if __name__ == "__main__":
    input_size = 16
    output_size = 4
    T = 1000

    key = jax.random.PRNGKey(0)
    kp, kdata = jax.random.split(key)
    params = init_params(kp, input_size, output_size)

    # batch=8 hits the no-padding path; batch=10 exercises the padded last tile.
    for batch in (8, 10):
        kx, ky, kf = jax.random.split(jax.random.fold_in(kdata, batch), 3)
        x = jax.random.normal(kx, (batch, input_size), jnp.float32)
        # y / f_x come out of the mean estimator with a trailing singleton dim
        y = jax.random.normal(ky, (batch, output_size, 1), jnp.float32)
        f_x = jax.random.normal(kf, (batch, output_size, 1), jnp.float32)
        t = jnp.array([[347.0]], dtype=jnp.float32)   # torch.Tensor([[t]])

        out = noise_estimator_forward(params, x, y, f_x, t, T=T)
        out = jax.block_until_ready(out)

        ref = _reference_forward(params, x, y, f_x, t, T)
        assert out.shape == (batch, output_size, 1), out.shape
        err = float(jnp.max(jnp.abs(out - ref)))
        assert err < 1e-4, err

    print("KERNEL_OK")
</pallas_src>

<mosaic_0001>
module attributes {stable_mosaic.version = 11 : i64} {
  func.func @_noise_estimator_kernel(%arg0: i32, %arg1: memref<1x1xf32, #tpu.memory_space<smem>>, %arg2: memref<8x16xf32, #tpu.memory_space<vmem>>, %arg3: memref<8x4xf32, #tpu.memory_space<vmem>>, %arg4: memref<8x4xf32, #tpu.memory_space<vmem>>, %arg5: memref<16x128xf32, #tpu.memory_space<vmem>>, %arg6: memref<4x128xf32, #tpu.memory_space<vmem>>, %arg7: memref<4x128xf32, #tpu.memory_space<vmem>>, %arg8: memref<1x128xf32, #tpu.memory_space<vmem>>, %arg9: memref<1x128xf32, #tpu.memory_space<vmem>>, %arg10: memref<1x128xf32, #tpu.memory_space<vmem>>, %arg11: memref<128x128xf32, #tpu.memory_space<vmem>>, %arg12: memref<1x128xf32, #tpu.memory_space<vmem>>, %arg13: memref<1x128xf32, #tpu.memory_space<vmem>>, %arg14: memref<1x128xf32, #tpu.memory_space<vmem>>, %arg15: memref<128x128xf32, #tpu.memory_space<vmem>>, %arg16: memref<1x128xf32, #tpu.memory_space<vmem>>, %arg17: memref<1x128xf32, #tpu.memory_space<vmem>>, %arg18: memref<1x128xf32, #tpu.memory_space<vmem>>, %arg19: memref<128x4xf32, #tpu.memory_space<vmem>>, %arg20: memref<1x4xf32, #tpu.memory_space<vmem>>, %arg21: memref<8x4xf32, #tpu.memory_space<vmem>>) attributes {dimension_semantics = [#tpu.dimension_semantics<parallel>], iteration_bounds = array<i64: 1>, scalar_prefetch = 0 : i64, scratch_operands = 0 : i64, tpu.core_type = #tpu.core_type<tc>, window_params = [{transform_indices = @transform_0, window_bounds = array<i64: 1, 1>}, {transform_indices = @transform_1, window_bounds = array<i64: 8, 16>}, {transform_indices = @transform_2, window_bounds = array<i64: 8, 4>}, {transform_indices = @transform_3, window_bounds = array<i64: 8, 4>}, {pipeline_mode = #tpu.pipeline_mode<synchronous>, transform_indices = @transform_4, window_bounds = array<i64: 16, 128>}, {pipeline_mode = #tpu.pipeline_mode<synchronous>, transform_indices = @transform_5, window_bounds = array<i64: 4, 128>}, {pipeline_mode = #tpu.pipeline_mode<synchronous>, transform_indices = @transform_6, window_bounds = array<i64: 4, 128>}, {pipeline_mode = #tpu.pipeline_mode<synchronous>, transform_indices = @transform_7, window_bounds = array<i64: 1, 128>}, {pipeline_mode = #tpu.pipeline_mode<synchronous>, transform_indices = @transform_8, window_bounds = array<i64: 1, 128>}, {pipeline_mode = #tpu.pipeline_mode<synchronous>, transform_indices = @transform_9, window_bounds = array<i64: 1, 128>}, {pipeline_mode = #tpu.pipeline_mode<synchronous>, transform_indices = @transform_10, window_bounds = array<i64: 128, 128>}, {pipeline_mode = #tpu.pipeline_mode<synchronous>, transform_indices = @transform_11, window_bounds = array<i64: 1, 128>}, {pipeline_mode = #tpu.pipeline_mode<synchronous>, transform_indices = @transform_12, window_bounds = array<i64: 1, 128>}, {pipeline_mode = #tpu.pipeline_mode<synchronous>, transform_indices = @transform_13, window_bounds = array<i64: 1, 128>}, {pipeline_mode = #tpu.pipeline_mode<synchronous>, transform_indices = @transform_14, window_bounds = array<i64: 128, 128>}, {pipeline_mode = #tpu.pipeline_mode<synchronous>, transform_indices = @transform_15, window_bounds = array<i64: 1, 128>}, {pipeline_mode = #tpu.pipeline_mode<synchronous>, transform_indices = @transform_16, window_bounds = array<i64: 1, 128>}, {pipeline_mode = #tpu.pipeline_mode<synchronous>, transform_indices = @transform_17, window_bounds = array<i64: 1, 128>}, {pipeline_mode = #tpu.pipeline_mode<synchronous>, transform_indices = @transform_18, window_bounds = array<i64: 128, 4>}, {pipeline_mode = #tpu.pipeline_mode<synchronous>, transform_indices = @transform_19, window_bounds = array<i64: 1, 4>}, {transform_indices = @transform_20, window_bounds = array<i64: 8, 4>}]} {
    %c0 = arith.constant 0 : index
    %c0_0 = arith.constant 0 : index
    %0 = memref.load %arg1[%c0, %c0_0] : memref<1x1xf32, #tpu.memory_space<smem>>
    %c0_1 = arith.constant 0 : index
    %c0_2 = arith.constant 0 : index
    %1 = vector.load %arg9[%c0_1, %c0_2] : memref<1x128xf32, #tpu.memory_space<vmem>>, vector<1x128xf32>
    %2 = vector.broadcast %0 : f32 to vector<1x128xf32>
    %3 = arith.mulf %1, %2 : vector<1x128xf32>
    %c0_3 = arith.constant 0 : index
    %c0_4 = arith.constant 0 : index
    %4 = vector.load %arg10[%c0_3, %c0_4] : memref<1x128xf32, #tpu.memory_space<vmem>>, vector<1x128xf32>
    %5 = arith.addf %3, %4 : vector<1x128xf32>
    %c0_5 = arith.constant 0 : index
    %c0_6 = arith.constant 0 : index
    %6 = vector.load %arg2[%c0_5, %c0_6] : memref<8x16xf32, #tpu.memory_space<vmem>>, vector<8x16xf32>
    %c0_7 = arith.constant 0 : index
    %c0_8 = arith.constant 0 : index
    %7 = vector.load %arg5[%c0_7, %c0_8] : memref<16x128xf32, #tpu.memory_space<vmem>>, vector<16x128xf32>
    %8 = vector.broadcast %5 : vector<1x128xf32> to vector<16x128xf32>
    %9 = arith.mulf %7, %8 : vector<16x128xf32>
    %cst = arith.constant dense<0.000000e+00> : vector<8x128xf32>
    %10 = tpu.matmul %6, %9, %cst {dimension_numbers = #tpu.dot_dimension_numbers<[1], [0], [0], [1], [0, 0, 1, 1], [], []>} : vector<8x16xf32>, vector<16x128xf32>, vector<8x128xf32> -> vector<8x128xf32>
    %c0_9 = arith.constant 0 : index
    %c0_10 = arith.constant 0 : index
    %11 = vector.load %arg3[%c0_9, %c0_10] : memref<8x4xf32, #tpu.memory_space<vmem>>, vector<8x4xf32>
    %c0_11 = arith.constant 0 : index
    %c0_12 = arith.constant 0 : index
    %12 = vector.load %arg6[%c0_11, %c0_12] : memref<4x128xf32, #tpu.memory_space<vmem>>, vector<4x128xf32>
    %13 = vector.broadcast %5 : vector<1x128xf32> to vector<4x128xf32>
    %14 = arith.mulf %12, %13 : vector<4x128xf32>
    %cst_13 = arith.constant dense<0.000000e+00> : vector<8x128xf32>
    %15 = tpu.matmul %11, %14, %cst_13 {dimension_numbers = #tpu.dot_dimension_numbers<[1], [0], [0], [1], [0, 0, 1, 1], [], []>} : vector<8x4xf32>, vector<4x128xf32>, vector<8x128xf32> -> vector<8x128xf32>
    %16 = arith.addf %10, %15 : vector<8x128xf32>
    %c0_14 = arith.constant 0 : index
    %c0_15 = arith.constant 0 : index
    %17 = vector.load %arg4[%c0_14, %c0_15] : memref<8x4xf32, #tpu.memory_space<vmem>>, vector<8x4xf32>
    %c0_16 = arith.constant 0 : index
    %c0_17 = arith.constant 0 : index
    %18 = vector.load %arg7[%c0_16, %c0_17] : memref<4x128xf32, #tpu.memory_space<vmem>>, vector<4x128xf32>
    %19 = vector.broadcast %5 : vector<1x128xf32> to vector<4x128xf32>
    %20 = arith.mulf %18, %19 : vector<4x128xf32>
    %cst_18 = arith.constant dense<0.000000e+00> : vector<8x128xf32>
    %21 = tpu.matmul %17, %20, %cst_18 {dimension_numbers = #tpu.dot_dimension_numbers<[1], [0], [0], [1], [0, 0, 1, 1], [], []>} : vector<8x4xf32>, vector<4x128xf32>, vector<8x128xf32> -> vector<8x128xf32>
    %22 = arith.addf %16, %21 : vector<8x128xf32>
    %c0_19 = arith.constant 0 : index
    %c0_20 = arith.constant 0 : index
    %23 = vector.load %arg8[%c0_19, %c0_20] : memref<1x128xf32, #tpu.memory_space<vmem>>, vector<1x128xf32>
    %24 = arith.mulf %23, %5 : vector<1x128xf32>
    %25 = vector.broadcast %24 : vector<1x128xf32> to vector<8x128xf32>
    %26 = arith.addf %22, %25 : vector<8x128xf32>
    %cst_21 = arith.constant 2.000000e+01 : f32
    %27 = vector.broadcast %cst_21 : f32 to vector<8x128xf32>
    %28 = arith.cmpf ogt, %26, %27 : vector<8x128xf32>
    %29 = math.exp %26 : vector<8x128xf32>
    %30 = math.log1p %29 : vector<8x128xf32>
    %31 = arith.select %28, %26, %30 : vector<8x128xi1>, vector<8x128xf32>
    %c0_22 = arith.constant 0 : index
    %c0_23 = arith.constant 0 : index
    %32 = vector.load %arg13[%c0_22, %c0_23] : memref<1x128xf32, #tpu.memory_space<vmem>>, vector<1x128xf32>
    %33 = vector.broadcast %0 : f32 to vector<1x128xf32>
    %34 = arith.mulf %32, %33 : vector<1x128xf32>
    %c0_24 = arith.constant 0 : index
    %c0_25 = arith.constant 0 : index
    %35 = vector.load %arg14[%c0_24, %c0_25] : memref<1x128xf32, #tpu.memory_space<vmem>>, vector<1x128xf32>
    %36 = arith.addf %34, %35 : vector<1x128xf32>
    %c0_26 = arith.constant 0 : index
    %c0_27 = arith.constant 0 : index
    %37 = vector.load %arg11[%c0_26, %c0_27] : memref<128x128xf32, #tpu.memory_space<vmem>>, vector<128x128xf32>
    %38 = vector.broadcast %36 : vector<1x128xf32> to vector<128x128xf32>
    %39 = arith.mulf %37, %38 : vector<128x128xf32>
    %cst_28 = arith.constant dense<0.000000e+00> : vector<8x128xf32>
    %40 = tpu.matmul %31, %39, %cst_28 {dimension_numbers = #tpu.dot_dimension_numbers<[1], [0], [0], [1], [0, 0, 1, 1], [], []>} : vector<8x128xf32>, vector<128x128xf32>, vector<8x128xf32> -> vector<8x128xf32>
    %c0_29 = arith.constant 0 : index
    %c0_30 = arith.constant 0 : index
    %41 = vector.load %arg12[%c0_29, %c0_30] : memref<1x128xf32, #tpu.memory_space<vmem>>, vector<1x128xf32>
    %42 = arith.mulf %41, %36 : vector<1x128xf32>
    %43 = vector.broadcast %42 : vector<1x128xf32> to vector<8x128xf32>
    %44 = arith.addf %40, %43 : vector<8x128xf32>
    %cst_31 = arith.constant 2.000000e+01 : f32
    %45 = vector.broadcast %cst_31 : f32 to vector<8x128xf32>
    %46 = arith.cmpf ogt, %44, %45 : vector<8x128xf32>
    %47 = math.exp %44 : vector<8x128xf32>
    %48 = math.log1p %47 : vector<8x128xf32>
    %49 = arith.select %46, %44, %48 : vector<8x128xi1>, vector<8x128xf32>
    %c0_32 = arith.constant 0 : index
    %c0_33 = arith.constant 0 : index
    %50 = vector.load %arg17[%c0_32, %c0_33] : memref<1x128xf32, #tpu.memory_space<vmem>>, vector<1x128xf32>
    %51 = vector.broadcast %0 : f32 to vector<1x128xf32>
    %52 = arith.mulf %50, %51 : vector<1x128xf32>
    %c0_34 = arith.constant 0 : index
    %c0_35 = arith.constant 0 : index
    %53 = vector.load %arg18[%c0_34, %c0_35] : memref<1x128xf32, #tpu.memory_space<vmem>>, vector<1x128xf32>
    %54 = arith.addf %52, %53 : vector<1x128xf32>
    %c0_36 = arith.constant 0 : index
    %c0_37 = arith.constant 0 : index
    %55 = vector.load %arg15[%c0_36, %c0_37] : memref<128x128xf32, #tpu.memory_space<vmem>>, vector<128x128xf32>
    %56 = vector.broadcast %54 : vector<1x128xf32> to vector<128x128xf32>
    %57 = arith.mulf %55, %56 : vector<128x128xf32>
    %cst_38 = arith.constant dense<0.000000e+00> : vector<8x128xf32>
    %58 = tpu.matmul %49, %57, %cst_38 {dimension_numbers = #tpu.dot_dimension_numbers<[1], [0], [0], [1], [0, 0, 1, 1], [], []>} : vector<8x128xf32>, vector<128x128xf32>, vector<8x128xf32> -> vector<8x128xf32>
    %c0_39 = arith.constant 0 : index
    %c0_40 = arith.constant 0 : index
    %59 = vector.load %arg16[%c0_39, %c0_40] : memref<1x128xf32, #tpu.memory_space<vmem>>, vector<1x128xf32>
    %60 = arith.mulf %59, %54 : vector<1x128xf32>
    %61 = vector.broadcast %60 : vector<1x128xf32> to vector<8x128xf32>
    %62 = arith.addf %58, %61 : vector<8x128xf32>
    %cst_41 = arith.constant 2.000000e+01 : f32
    %63 = vector.broadcast %cst_41 : f32 to vector<8x128xf32>
    %64 = arith.cmpf ogt, %62, %63 : vector<8x128xf32>
    %65 = math.exp %62 : vector<8x128xf32>
    %66 = math.log1p %65 : vector<8x128xf32>
    %67 = arith.select %64, %62, %66 : vector<8x128xi1>, vector<8x128xf32>
    %c0_42 = arith.constant 0 : index
    %c0_43 = arith.constant 0 : index
    %68 = vector.load %arg19[%c0_42, %c0_43] : memref<128x4xf32, #tpu.memory_space<vmem>>, vector<128x4xf32>
    %cst_44 = arith.constant dense<0.000000e+00> : vector<8x4xf32>
    %69 = tpu.matmul %67, %68, %cst_44 {dimension_numbers = #tpu.dot_dimension_numbers<[1], [0], [0], [1], [0, 0, 1, 1], [], []>} : vector<8x128xf32>, vector<128x4xf32>, vector<8x4xf32> -> vector<8x4xf32>
    %c0_45 = arith.constant 0 : index
    %c0_46 = arith.constant 0 : index
    %70 = vector.load %arg20[%c0_45, %c0_46] : memref<1x4xf32, #tpu.memory_space<vmem>>, vector<1x4xf32>
    %71 = vector.broadcast %70 : vector<1x4xf32> to vector<8x4xf32>
    %72 = arith.addf %69, %71 : vector<8x4xf32>
    %c0_47 = arith.constant 0 : index
    %c0_48 = arith.constant 0 : index
    %73 = vector.load %arg21[%c0_47, %c0_48] : memref<8x4xf32, #tpu.memory_space<vmem>>, vector<8x4xf32>
    tpu.vector_store %arg21[%c0_47, %c0_48], %72 {strides = array<i32>} : memref<8x4xf32, #tpu.memory_space<vmem>>, vector<8x4xf32>,
    return
  }
  func.func @transform_0(%arg0: i32) -> (i32, i32) {
    %c0_i32 = arith.constant 0 : i32
    %c0_i32_0 = arith.constant 0 : i32
    %c0_i32_1 = arith.constant 0 : i32
    return %c0_i32, %c0_i32_0 : i32, i32
  }
  func.func @transform_1(%arg0: i32) -> (i32, i32) {
    %c0_i32 = arith.constant 0 : i32
    %c0_i32_0 = arith.constant 0 : i32
    return %arg0, %c0_i32 : i32, i32
  }
  func.func @transform_2(%arg0: i32) -> (i32, i32) {
    %c0_i32 = arith.constant 0 : i32
    %c0_i32_0 = arith.constant 0 : i32
    return %arg0, %c0_i32 : i32, i32
  }
  func.func @transform_3(%arg0: i32) -> (i32, i32) {
    %c0_i32 = arith.constant 0 : i32
    %c0_i32_0 = arith.constant 0 : i32
    return %arg0, %c0_i32 : i32, i32
  }
  func.func @transform_4(%arg0: i32) -> (i32, i32) {
    %c0_i32 = arith.constant 0 : i32
    %c0_i32_0 = arith.constant 0 : i32
    %c0_i32_1 = arith.constant 0 : i32
    return %c0_i32, %c0_i32_0 : i32, i32
  }
  func.func @transform_5(%arg0: i32) -> (i32, i32) {
    %c0_i32 = arith.constant 0 : i32
    %c0_i32_0 = arith.constant 0 : i32
    %c0_i32_1 = arith.constant 0 : i32
    return %c0_i32, %c0_i32_0 : i32, i32
  }
  func.func @transform_6(%arg0: i32) -> (i32, i32) {
    %c0_i32 = arith.constant 0 : i32
    %c0_i32_0 = arith.constant 0 : i32
    %c0_i32_1 = arith.constant 0 : i32
    return %c0_i32, %c0_i32_0 : i32, i32
  }
  func.func @transform_7(%arg0: i32) -> (i32, i32) {
    %c0_i32 = arith.constant 0 : i32
    %c0_i32_0 = arith.constant 0 : i32
    %c0_i32_1 = arith.constant 0 : i32
    return %c0_i32, %c0_i32_0 : i32, i32
  }
  func.func @transform_8(%arg0: i32) -> (i32, i32) {
    %c0_i32 = arith.constant 0 : i32
    %c0_i32_0 = arith.constant 0 : i32
    %c0_i32_1 = arith.constant 0 : i32
    return %c0_i32, %c0_i32_0 : i32, i32
  }
  func.func @transform_9(%arg0: i32) -> (i32, i32) {
    %c0_i32 = arith.constant 0 : i32
    %c0_i32_0 = arith.constant 0 : i32
    %c0_i32_1 = arith.constant 0 : i32
    return %c0_i32, %c0_i32_0 : i32, i32
  }
  func.func @transform_10(%arg0: i32) -> (i32, i32) {
    %c0_i32 = arith.constant 0 : i32
    %c0_i32_0 = arith.constant 0 : i32
    %c0_i32_1 = arith.constant 0 : i32
    return %c0_i32, %c0_i32_0 : i32, i32
  }
  func.func @transform_11(%arg0: i32) -> (i32, i32) {
    %c0_i32 = arith.constant 0 : i32
    %c0_i32_0 = arith.constant 0 : i32
    %c0_i32_1 = arith.constant 0 : i32
    return %c0_i32, %c0_i32_0 : i32, i32
  }
  func.func @transform_12(%arg0: i32) -> (i32, i32) {
    %c0_i32 = arith.constant 0 : i32
    %c0_i32_0 = arith.constant 0 : i32
    %c0_i32_1 = arith.constant 0 : i32
    return %c0_i32, %c0_i32_0 : i32, i32
  }
  func.func @transform_13(%arg0: i32) -> (i32, i32) {
    %c0_i32 = arith.constant 0 : i32
    %c0_i32_0 = arith.constant 0 : i32
    %c0_i32_1 = arith.constant 0 : i32
    return %c0_i32, %c0_i32_0 : i32, i32
  }
  func.func @transform_14(%arg0: i32) -> (i32, i32) {
    %c0_i32 = arith.constant 0 : i32
    %c0_i32_0 = arith.constant 0 : i32
    %c0_i32_1 = arith.constant 0 : i32
    return %c0_i32, %c0_i32_0 : i32, i32
  }
  func.func @transform_15(%arg0: i32) -> (i32, i32) {
    %c0_i32 = arith.constant 0 : i32
    %c0_i32_0 = arith.constant 0 : i32
    %c0_i32_1 = arith.constant 0 : i32
    return %c0_i32, %c0_i32_0 : i32, i32
  }
  func.func @transform_16(%arg0: i32) -> (i32, i32) {
    %c0_i32 = arith.constant 0 : i32
    %c0_i32_0 = arith.constant 0 : i32
    %c0_i32_1 = arith.constant 0 : i32
    return %c0_i32, %c0_i32_0 : i32, i32
  }
  func.func @transform_17(%arg0: i32) -> (i32, i32) {
    %c0_i32 = arith.constant 0 : i32
    %c0_i32_0 = arith.constant 0 : i32
    %c0_i32_1 = arith.constant 0 : i32
    return %c0_i32, %c0_i32_0 : i32, i32
  }
  func.func @transform_18(%arg0: i32) -> (i32, i32) {
    %c0_i32 = arith.constant 0 : i32
    %c0_i32_0 = arith.constant 0 : i32
    %c0_i32_1 = arith.constant 0 : i32
    return %c0_i32, %c0_i32_0 : i32, i32
  }
  func.func @transform_19(%arg0: i32) -> (i32, i32) {
    %c0_i32 = arith.constant 0 : i32
    %c0_i32_0 = arith.constant 0 : i32
    %c0_i32_1 = arith.constant 0 : i32
    return %c0_i32, %c0_i32_0 : i32, i32
  }
  func.func @transform_20(%arg0: i32) -> (i32, i32) {
    %c0_i32 = arith.constant 0 : i32
    %c0_i32_0 = arith.constant 0 : i32
    return %arg0, %c0_i32 : i32, i32
  }
}

</mosaic_0001>

<llo_original>
// kernel: noise_estimator_forward.1
$region0: #{noise_estimator_forward.1}
  #allocation0 [shape = 'u32[]', space=smem, size = 0x4, offset = 0x4, fixed_abs, tag = 'smem constant byte address 0x4 - core index']
  #allocation1 [shape = 'u32[144,128]{1,0:T(1,128)}', space=vmem, size = 0x12000, scoped, tag = 'internal scratch']
  #allocation2 [shape = 'f32[1,1]{1,0:T(1,128)S(6)}', space=smem, size = 0x200, scoped, tag = 'scoped memory for noise_estimator_forward.1']
  %s0 = inlined_call_operand.<no memory space> [shape: f32[1,1], index: 0, kind: input, shape index: {}]
  %s1 = inlined_call_operand.vmem [shape: f32[8,16], index: 1, kind: input, shape index: {}]
  %s2 = inlined_call_operand.vmem [shape: f32[8,4], index: 2, kind: input, shape index: {}]
  %s3 = inlined_call_operand.vmem [shape: f32[8,4], index: 3, kind: input, shape index: {}]
  %s4 = inlined_call_operand.vmem [shape: f32[16,128], index: 4, kind: input, shape index: {}]
  %s5 = inlined_call_operand.vmem [shape: f32[4,128], index: 5, kind: input, shape index: {}]
  %s6 = inlined_call_operand.vmem [shape: f32[4,128], index: 6, kind: input, shape index: {}]
  %s7 = inlined_call_operand.vmem [shape: f32[1,128], index: 7, kind: input, shape index: {}]
  %s8 = inlined_call_operand.vmem [shape: f32[1,128], index: 8, kind: input, shape index: {}]
  %s9 = inlined_call_operand.vmem [shape: f32[1,128], index: 9, kind: input, shape index: {}]
  %s10 = inlined_call_operand.vmem [shape: f32[128,128], index: 10, kind: input, shape index: {}]
  %s11 = inlined_call_operand.vmem [shape: f32[1,128], index: 11, kind: input, shape index: {}]
  %s12 = inlined_call_operand.vmem [shape: f32[1,128], index: 12, kind: input, shape index: {}]
  %s13 = inlined_call_operand.vmem [shape: f32[1,128], index: 13, kind: input, shape index: {}]
  %s14 = inlined_call_operand.hbm [shape: f32[128,128], index: 14, kind: input, shape index: {}]
  %s15 = inlined_call_operand.vmem [shape: f32[1,128], index: 15, kind: input, shape index: {}]
  %s16 = inlined_call_operand.vmem [shape: f32[1,128], index: 16, kind: input, shape index: {}]
  %s17 = inlined_call_operand.vmem [shape: f32[1,128], index: 17, kind: input, shape index: {}]
  %s18 = inlined_call_operand.vmem [shape: f32[128,4], index: 18, kind: input, shape index: {}]
  %s19 = inlined_call_operand.vmem [shape: f32[1,4], index: 19, kind: input, shape index: {}]
  %s20 = inlined_call_operand.vmem [shape: f32[8,4], index: 20, kind: output, shape index: {}]
  %s21 = sld [smem:[#allocation0]]
  $region94: #{noise_estimator_forward.1} parent=0
    _
  %s23 = ssub.s32 1, %s21
  %s24 = scalar_select 0, %s23, %s21
  %25 = sst [smem:[#allocation2]] %s0
  $region1: #{noise_estimator_forward.1} parent=0
    #allocation3 [shape = 'u8[65536]{0}', space=vmem, size = 0x10000, scoped, tag = 'input window, operand 14, single buffered']
    #allocation4 [shape = 's32[1]{0}', space=sflag, size = 0x4, scoped, tag = 'scoped memory for noise_estimator_forward.1']
    %26 = vsyncpa [#allocation4], 0
    // Predicated region
    $region2: #{noise_estimator_forward.1} parent=1 // pred_check
      _
    $region3: #{noise_estimator_forward.1} parent=1 // pred_check_branch
      %28 = sbr.rel (0) target = $region5
    $region4: #{noise_estimator_forward.1} parent=1 // pred_region
      _
    $region5: #{noise_estimator_forward.1} parent=1 // pred_fallthru
      _
    // Predicated region
    $region6: #{noise_estimator_forward.1} parent=1 // pred_check
      _
    $region7: #{noise_estimator_forward.1} parent=1 // pred_check_branch
      %30 = sbr.rel (0) target = $region9
    $region8: #{noise_estimator_forward.1} parent=1 // pred_region
      _
    $region9: #{noise_estimator_forward.1} parent=1 // pred_fallthru
      _
    // Predicated region
    $region10: #{noise_estimator_forward.1} parent=1 // pred_check
      _
    $region11: #{noise_estimator_forward.1} parent=1 // pred_check_branch
      %32 = sbr.rel (0) target = $region13
    $region12: #{noise_estimator_forward.1} parent=1 // pred_region
      _
    $region13: #{noise_estimator_forward.1} parent=1 // pred_fallthru
      _
    // Predicated region
    $region14: #{noise_estimator_forward.1} parent=1 // pred_check
      _
    $region15: #{noise_estimator_forward.1} parent=1 // pred_check_branch
      %34 = sbr.rel (0) target = $region17
    $region16: #{noise_estimator_forward.1} parent=1 // pred_region
      _
    $region17: #{noise_estimator_forward.1} parent=1 // pred_fallthru
      _
    // Predicated region
    $region18: #{noise_estimator_forward.1} parent=1 // pred_check
      _
    $region19: #{noise_estimator_forward.1} parent=1 // pred_check_branch
      %36 = sbr.rel (0) target = $region21
    $region20: #{noise_estimator_forward.1} parent=1 // pred_region
      _
    $region21: #{noise_estimator_forward.1} parent=1 // pred_fallthru
      _
    // Predicated region
    $region22: #{noise_estimator_forward.1} parent=1 // pred_check
      _
    $region23: #{noise_estimator_forward.1} parent=1 // pred_check_branch
      %38 = sbr.rel (0) target = $region25
    $region24: #{noise_estimator_forward.1} parent=1 // pred_region
      _
    $region25: #{noise_estimator_forward.1} parent=1 // pred_fallthru
      _
    // Predicated region
    $region26: #{noise_estimator_forward.1} parent=1 // pred_check
      _
    $region27: #{noise_estimator_forward.1} parent=1 // pred_check_branch
      %40 = sbr.rel (0) target = $region29
    $region28: #{noise_estimator_forward.1} parent=1 // pred_region
      _
    $region29: #{noise_estimator_forward.1} parent=1 // pred_fallthru
      _
    // Predicated region
    $region30: #{noise_estimator_forward.1} parent=1 // pred_check
      _
    $region31: #{noise_estimator_forward.1} parent=1 // pred_check_branch
      %42 = sbr.rel (0) target = $region33
    $region32: #{noise_estimator_forward.1} parent=1 // pred_region
      _
    $region33: #{noise_estimator_forward.1} parent=1 // pred_fallthru
      _
    // Predicated region
    $region34: #{noise_estimator_forward.1} parent=1 // pred_check
      _
    $region35: #{noise_estimator_forward.1} parent=1 // pred_check_branch
      %44 = sbr.rel (0) target = $region37
    $region36: #{noise_estimator_forward.1} parent=1 // pred_region
      _
    $region37: #{noise_estimator_forward.1} parent=1 // pred_fallthru
      _
    // Predicated region
    $region38: #{noise_estimator_forward.1} parent=1 // pred_check
      _
    $region39: #{noise_estimator_forward.1} parent=1 // pred_check_branch
      %46 = sbr.rel (0) target = $region41
    $region40: #{noise_estimator_forward.1} parent=1 // pred_region
      _
    $region41: #{noise_estimator_forward.1} parent=1 // pred_fallthru
      _
    // Predicated region
    $region42: #{noise_estimator_forward.1} parent=1 // pred_check
      _
    $region43: #{noise_estimator_forward.1} parent=1 // pred_check_branch
      %48 = sbr.rel (0) target = $region45
    $region44: #{noise_estimator_forward.1} parent=1 // pred_region
      _
    $region45: #{noise_estimator_forward.1} parent=1 // pred_fallthru
      _
    // Predicated region
    $region46: #{noise_estimator_forward.1} parent=1 // pred_check
      _
    $region47: #{noise_estimator_forward.1} parent=1 // pred_check_branch
      %50 = sbr.rel (0) target = $region49
    $region48: #{noise_estimator_forward.1} parent=1 // pred_region
      _
    $region49: #{noise_estimator_forward.1} parent=1 // pred_fallthru
      _
    // Predicated region
    $region50: #{noise_estimator_forward.1} parent=1 // pred_check
      _
    $region51: #{noise_estimator_forward.1} parent=1 // pred_check_branch
      %52 = sbr.rel (0) target = $region53
    $region52: #{noise_estimator_forward.1} parent=1 // pred_region
      _
    $region53: #{noise_estimator_forward.1} parent=1 // pred_fallthru
      _
    // Predicated region
    $region54: #{noise_estimator_forward.1} parent=1 // pred_check
      _
    $region55: #{noise_estimator_forward.1} parent=1 // pred_check_branch
      %54 = sbr.rel (0) target = $region57
    $region56: #{noise_estimator_forward.1} parent=1 // pred_region
      _
    $region57: #{noise_estimator_forward.1} parent=1 // pred_fallthru
      _
    // Predicated region
    $region58: #{noise_estimator_forward.1} parent=1 // pred_check
      _
    $region59: #{noise_estimator_forward.1} parent=1 // pred_check_branch
      %56 = sbr.rel (0) target = $region61
    $region60: #{noise_estimator_forward.1} parent=1 // pred_region
      %s58 = ssub.s32 2048, 2048
      %59 = vsyncadd [#allocation4], %s58
      %s60 = sshll.u32 [#allocation3], 4
      %s61 = int_to_ptr.vmem [resolvable:$true] %s60
      %66 = dma.hbm_to_vmem [thread:$0]  %s14, 2048, %s61, [#allocation4], 128, 128, 8
    $region61: #{noise_estimator_forward.1} parent=1 // pred_fallthru
      _
    // Predicated region
    $region62: #{noise_estimator_forward.1} parent=1 // pred_check
      _
    $region63: #{noise_estimator_forward.1} parent=1 // pred_check_branch
      %68 = sbr.rel (0) target = $region65
    $region64: #{noise_estimator_forward.1} parent=1 // pred_region
      _
    $region65: #{noise_estimator_forward.1} parent=1 // pred_fallthru
      _
    // Predicated region
    $region66: #{noise_estimator_forward.1} parent=1 // pred_check
      _
    $region67: #{noise_estimator_forward.1} parent=1 // pred_check_branch
      %70 = sbr.rel (0) target = $region69
    $region68: #{noise_estimator_forward.1} parent=1 // pred_region
      _
    $region69: #{noise_estimator_forward.1} parent=1 // pred_fallthru
      _
    // Predicated region
    $region70: #{noise_estimator_forward.1} parent=1 // pred_check
      _
    $region71: #{noise_estimator_forward.1} parent=1 // pred_check_branch
      %72 = sbr.rel (0) target = $region73
    $region72: #{noise_estimator_forward.1} parent=1 // pred_region
      _
    $region73: #{noise_estimator_forward.1} parent=1 // pred_fallthru
      _
    // Predicated region
    $region74: #{noise_estimator_forward.1} parent=1 // pred_check
      _
    $region75: #{noise_estimator_forward.1} parent=1 // pred_check_branch
      %74 = sbr.rel (0) target = $region77
    $region76: #{noise_estimator_forward.1} parent=1 // pred_region
      _
    $region77: #{noise_estimator_forward.1} parent=1 // pred_fallthru
      _
    // Predicated region
    $region78: #{noise_estimator_forward.1} parent=1 // pred_check
      _
    $region79: #{noise_estimator_forward.1} parent=1 // pred_check_branch
      %76 = sbr.rel (0) target = $region81
    $region80: #{noise_estimator_forward.1} parent=1 // pred_region
      _
    $region81: #{noise_estimator_forward.1} parent=1 // pred_fallthru
      _
    // Predicated region
    $region82: #{noise_estimator_forward.1} parent=1 // pred_check
      _
    $region83: #{noise_estimator_forward.1} parent=1 // pred_check_branch
      %78 = sbr.rel (0) target = $region85
    $region84: #{noise_estimator_forward.1} parent=1 // pred_region
      %79 = dma.done [#allocation4], 2048
    $region85: #{noise_estimator_forward.1} parent=1 // pred_fallthru
      _
    %s80 = sld [smem:[#allocation2]]
    %v81 = vld [vmem:[%s8] sm:$0x1]
    %v82 = vstv %s80
    %v83 = vmul.f32 %v81, %v82
    %v84 = vld [vmem:[%s9] sm:$0x1]
    %v85 = vadd.f32 %v83, %v84
    %v86 = vld [vmem:[%s1] sm:$0xff]
    %v87 = vld [vmem:[%s4] sm:$0xff]
    %v88 = vld [vmem:[%s4 + $0x8] sm:$0xff]
    %v90 = vlaneseq
    %v91 = vshrl.u32 %v90, 7
    %v92 = vsub.s32 0, %v91
    %v93 = vrot.slane %v85, %v92
    %v95 = vmul.f32 %v87, %v93
    %v96 = vmul.f32 %v88, %v93
    %v97 = vld [vmem:[%s2] sm:$0xff]
    %v98 = vld [vmem:[%s5] sm:$0xf]
    %v99 = vmul.f32 %v98, %v93
    %vm100 = vcmask 31744
    %v102 = vsel %vm100, %v97, 0
    %vm104 = vcmask 1043456
    %v106 = vsel %vm104, %v99, 0
    %108 = vmatprep.subr.mxu0 0.0
    %109 = vmatpush1.msra.mxu0 0.0
    %110 = vmatprep.subr.mxu0 0.0
    %111 = vmatpush1.msra.mxu0 0.0
    %112 = vmatprep.subr.mxu0 0.0
    %113 = vmatpush1.msra.mxu0 0.0
    %114 = vmatprep.subr.mxu0 0.0
    %115 = vmatpush1.msra.mxu0 0.0
    %116 = vmatprep.subr.mxu0 0.0
    %117 = vmatpush1.msra.mxu0 0.0
    %118 = vmatprep.subr.mxu0 0.0
    %119 = vmatpush1.msra.mxu0 0.0
    %120 = vmatprep.subr.mxu0 0.0
    %121 = vmatpush1.msra.mxu0 0.0
    %122 = vmatprep.subr.mxu0 0.0
    %123 = vmatpush1.msra.mxu0 0.0
    %124 = vmatprep.subr.mxu0 0.0
    %125 = vmatpush1.msra.mxu0 0.0
    %126 = vmatprep.subr.mxu0 0.0
    %127 = vmatpush1.msra.mxu0 0.0
    %128 = vmatprep.subr.mxu0 0.0
    %129 = vmatpush1.msra.mxu0 0.0
    %130 = vmatprep.subr.mxu0 0.0
    %131 = vmatpush1.msra.mxu0 0.0
    %132 = vmatprep.subr.mxu0 0.0
    %133 = vmatpush1.msra.mxu0 0.0
    %134 = vmatprep.subr.mxu0 0.0
    %135 = vmatpush1.msra.mxu0 0.0
    %136 = vmatprep.subr.mxu0 0.0
    %137 = vmatpush1.msra.mxu0 0.0
    %138 = vmatprep.subr.mxu0 0.0
    %139 = vmatpush1.msra.mxu0 %v106
    %140 = vmatprep.subr.mxu0 0.0
    %141 = vmatpush2.msra.mxu0 0.0
    %142 = vmatprep.subr.mxu0 0.0
    %143 = vmatpush2.msra.mxu0 0.0
    %144 = vmatprep.subr.mxu0 0.0
    %145 = vmatpush2.msra.mxu0 0.0
    %146 = vmatprep.subr.mxu0 0.0
    %147 = vmatpush2.msra.mxu0 0.0
    %148 = vmatprep.subr.mxu0 0.0
    %149 = vmatpush2.msra.mxu0 0.0
    %150 = vmatprep.subr.mxu0 0.0
    %151 = vmatpush2.msra.mxu0 0.0
    %152 = vmatprep.subr.mxu0 0.0
    %153 = vmatpush2.msra.mxu0 0.0
    %154 = vmatprep.subr.mxu0 0.0
    %155 = vmatpush2.msra.mxu0 0.0
    %156 = vmatprep.subr.mxu0 0.0
    %157 = vmatpush2.msra.mxu0 0.0
    %158 = vmatprep.subr.mxu0 0.0
    %159 = vmatpush2.msra.mxu0 0.0
    %160 = vmatprep.subr.mxu0 0.0
    %161 = vmatpush2.msra.mxu0 0.0
    %162 = vmatprep.subr.mxu0 0.0
    %163 = vmatpush2.msra.mxu0 0.0
    %164 = vmatprep.subr.mxu0 0.0
    %165 = vmatpush2.msra.mxu0 0.0
    %166 = vmatprep.subr.mxu0 0.0
    %167 = vmatpush2.msra.mxu0 0.0
    %168 = vmatprep.subr.mxu0 0.0
    %169 = vmatpush2.msra.mxu0 0.0
    %170 = vmatprep.subr.mxu0 0.0
    %171 = vmatpush2.msra.mxu0 0.0
    %172 = vmatprep.mubr.f32.mxu0 0.0
    %173 = vmatmul.mubr.f32.gmra.mxu0 %v102
    %v174 = vpop.f32.mrf.mxu0
    %v175 = vadd.f32 0.0, %v174
    %v176 = vpop.f32.mrf.mxu0
    %177 = vdwg.mxu0
    %vm178 = vcmask 130048
    %v180 = vsel %vm178, %v86, 0
    %182 = vmatprep.subr.mxu0 0.0
    %183 = vmatpush1.msra.mxu0 0.0
    %184 = vmatprep.subr.mxu0 0.0
    %185 = vmatpush1.msra.mxu0 0.0
    %186 = vmatprep.subr.mxu0 0.0
    %187 = vmatpush1.msra.mxu0 0.0
    %188 = vmatprep.subr.mxu0 0.0
    %189 = vmatpush1.msra.mxu0 0.0
    %190 = vmatprep.subr.mxu0 0.0
    %191 = vmatpush1.msra.mxu0 0.0
    %192 = vmatprep.subr.mxu0 0.0
    %193 = vmatpush1.msra.mxu0 0.0
    %194 = vmatprep.subr.mxu0 0.0
    %195 = vmatpush1.msra.mxu0 0.0
    %196 = vmatprep.subr.mxu0 0.0
    %197 = vmatpush1.msra.mxu0 0.0
    %198 = vmatprep.subr.mxu0 0.0
    %199 = vmatpush1.msra.mxu0 0.0
    %200 = vmatprep.subr.mxu0 0.0
    %201 = vmatpush1.msra.mxu0 0.0
    %202 = vmatprep.subr.mxu0 0.0
    %203 = vmatpush1.msra.mxu0 0.0
    %204 = vmatprep.subr.mxu0 0.0
    %205 = vmatpush1.msra.mxu0 0.0
    %206 = vmatprep.subr.mxu0 0.0
    %207 = vmatpush1.msra.mxu0 0.0
    %208 = vmatprep.subr.mxu0 0.0
    %209 = vmatpush1.msra.mxu0 0.0
    %210 = vmatprep.subr.mxu0 0.0
    %211 = vmatpush1.msra.mxu0 %v96
    %212 = vmatprep.subr.mxu0 0.0
    %213 = vmatpush1.msra.mxu0 %v95
    %214 = vmatprep.subr.mxu0 0.0
    %215 = vmatpush2.msra.mxu0 0.0
    %216 = vmatprep.subr.mxu0 0.0
    %217 = vmatpush2.msra.mxu0 0.0
    %218 = vmatprep.subr.mxu0 0.0
    %219 = vmatpush2.msra.mxu0 0.0
    %220 = vmatprep.subr.mxu0 0.0
    %221 = vmatpush2.msra.mxu0 0.0
    %222 = vmatprep.subr.mxu0 0.0
    %223 = vmatpush2.msra.mxu0 0.0
    %224 = vmatprep.subr.mxu0 0.0
    %225 = vmatpush2.msra.mxu0 0.0
    %226 = vmatprep.subr.mxu0 0.0
    %227 = vmatpush2.msra.mxu0 0.0
    %228 = vmatprep.subr.mxu0 0.0
    %229 = vmatpush2.msra.mxu0 0.0
    %230 = vmatprep.subr.mxu0 0.0
    %231 = vmatpush2.msra.mxu0 0.0
    %232 = vmatprep.subr.mxu0 0.0
    %233 = vmatpush2.msra.mxu0 0.0
    %234 = vmatprep.subr.mxu0 0.0
    %235 = vmatpush2.msra.mxu0 0.0
    %236 = vmatprep.subr.mxu0 0.0
    %237 = vmatpush2.msra.mxu0 0.0
    %238 = vmatprep.subr.mxu0 0.0
    %239 = vmatpush2.msra.mxu0 0.0
    %240 = vmatprep.subr.mxu0 0.0
    %241 = vmatpush2.msra.mxu0 0.0
    %242 = vmatprep.subr.mxu0 0.0
    %243 = vmatpush2.msra.mxu0 0.0
    %244 = vmatprep.subr.mxu0 0.0
    %245 = vmatpush2.msra.mxu0 0.0
    %246 = vmatprep.mubr.f32.mxu0 0.0
    %247 = vmatmul.mubr.f32.gmra.mxu0 %v180
    %v248 = vpop.f32.mrf.mxu0
    %v249 = vadd.f32 %v175, %v248
    %v250 = vpop.f32.mrf.mxu0
    %251 = vdwg.mxu0
    %v252 = vld [vmem:[%s3] sm:$0xff]
    %v253 = vld [vmem:[%s6] sm:$0xf]
    %v254 = vmul.f32 %v253, %v93
    %v256 = vsel %vm100, %v252, 0
    %v259 = vsel %vm104, %v254, 0
    %261 = vmatprep.subr.mxu0 0.0
    %262 = vmatpush1.msra.mxu0 0.0
    %263 = vmatprep.subr.mxu0 0.0
    %264 = vmatpush1.msra.mxu0 0.0
    %265 = vmatprep.subr.mxu0 0.0
    %266 = vmatpush1.msra.mxu0 0.0
    %267 = vmatprep.subr.mxu0 0.0
    %268 = vmatpush1.msra.mxu0 0.0
    %269 = vmatprep.subr.mxu0 0.0
    %270 = vmatpush1.msra.mxu0 0.0
    %271 = vmatprep.subr.mxu0 0.0
    %272 = vmatpush1.msra.mxu0 0.0
    %273 = vmatprep.subr.mxu0 0.0
    %274 = vmatpush1.msra.mxu0 0.0
    %275 = vmatprep.subr.mxu0 0.0
    %276 = vmatpush1.msra.mxu0 0.0
    %277 = vmatprep.subr.mxu0 0.0
    %278 = vmatpush1.msra.mxu0 0.0
    %279 = vmatprep.subr.mxu0 0.0
    %280 = vmatpush1.msra.mxu0 0.0
    %281 = vmatprep.subr.mxu0 0.0
    %282 = vmatpush1.msra.mxu0 0.0
    %283 = vmatprep.subr.mxu0 0.0
    %284 = vmatpush1.msra.mxu0 0.0
    %285 = vmatprep.subr.mxu0 0.0
    %286 = vmatpush1.msra.mxu0 0.0
    %287 = vmatprep.subr.mxu0 0.0
    %288 = vmatpush1.msra.mxu0 0.0
    %289 = vmatprep.subr.mxu0 0.0
    %290 = vmatpush1.msra.mxu0 0.0
    %291 = vmatprep.subr.mxu0 0.0
    %292 = vmatpush1.msra.mxu0 %v259
    %293 = vmatprep.subr.mxu0 0.0
    %294 = vmatpush2.msra.mxu0 0.0
    %295 = vmatprep.subr.mxu0 0.0
    %296 = vmatpush2.msra.mxu0 0.0
    %297 = vmatprep.subr.mxu0 0.0
    %298 = vmatpush2.msra.mxu0 0.0
    %299 = vmatprep.subr.mxu0 0.0
    %300 = vmatpush2.msra.mxu0 0.0
    %301 = vmatprep.subr.mxu0 0.0
    %302 = vmatpush2.msra.mxu0 0.0
    %303 = vmatprep.subr.mxu0 0.0
    %304 = vmatpush2.msra.mxu0 0.0
    %305 = vmatprep.subr.mxu0 0.0
    %306 = vmatpush2.msra.mxu0 0.0
    %307 = vmatprep.subr.mxu0 0.0
    %308 = vmatpush2.msra.mxu0 0.0
    %309 = vmatprep.subr.mxu0 0.0
    %310 = vmatpush2.msra.mxu0 0.0
    %311 = vmatprep.subr.mxu0 0.0
    %312 = vmatpush2.msra.mxu0 0.0
    %313 = vmatprep.subr.mxu0 0.0
    %314 = vmatpush2.msra.mxu0 0.0
    %315 = vmatprep.subr.mxu0 0.0
    %316 = vmatpush2.msra.mxu0 0.0
    %317 = vmatprep.subr.mxu0 0.0
    %318 = vmatpush2.msra.mxu0 0.0
    %319 = vmatprep.subr.mxu0 0.0
    %320 = vmatpush2.msra.mxu0 0.0
    %321 = vmatprep.subr.mxu0 0.0
    %322 = vmatpush2.msra.mxu0 0.0
    %323 = vmatprep.subr.mxu0 0.0
    %324 = vmatpush2.msra.mxu0 0.0
    %325 = vmatprep.mubr.f32.mxu0 0.0
    %326 = vmatmul.mubr.f32.gmra.mxu0 %v256
    %v327 = vpop.f32.mrf.mxu0
    %v328 = vadd.f32 0.0, %v327
    %v329 = vpop.f32.mrf.mxu0
    %330 = vdwg.mxu0
    %v331 = vadd.f32 %v249, %v328
    %v332 = vld [vmem:[%s7] sm:$0x1]
    %v333 = vmul.f32 %v332, %v85
    %v335 = vlaneseq
    %v336 = vshrl.u32 %v335, 7
    %v337 = vsub.s32 0, %v336
    %v338 = vrot.slane %v333, %v337
    %v340 = vadd.f32 %v331, %v338
    %vm341 = vcmp.gt.f32.partialorder %v340, 20.0
    %v342 = vmul.f32 %v340, 1.442695
    %v343 = vpow.pop %v342
    %v344 = vadd.f32 %v343, 1.0
    %v345 = vlog2.pop %v344
    %v346 = vmul.f32 %v345, 0.6931472
    %v347 = vmul.f32 -0.5, %v343
    %v348 = vadd.f32 %v347, 1.0
    %v349 = vmul.f32 %v348, %v343
    %v350 = vand.u32 2147483647, %v343
    %vm351 = vcmp.lt.f32.partialorder %v350, 0.0004427343
    %v352 = vsel %vm351, %v349, %v346
    %v353 = vsel %vm341, %v340, %v352
    %v354 = vld [vmem:[%s12] sm:$0x1]
    %v355 = vmul.f32 %v354, %v82
    %v356 = vld [vmem:[%s13] sm:$0x1]
    %v357 = vadd.f32 %v355, %v356
    %v358 = vld [vmem:[%s10] sm:$0xff]
    %v359 = vld [vmem:[%s10 + $0x8] sm:$0xff]
    %v360 = vld [vmem:[%s10 + $0x10] sm:$0xff]
    %v361 = vld [vmem:[%s10 + $0x18] sm:$0xff]
    %v362 = vld [vmem:[%s10 + $0x20] sm:$0xff]
    %v363 = vld [vmem:[%s10 + $0x28] sm:$0xff]
    %v364 = vld [vmem:[%s10 + $0x30] sm:$0xff]
    %v365 = vld [vmem:[%s10 + $0x38] sm:$0xff]
    %v366 = vld [vmem:[%s10 + $0x40] sm:$0xff]
    %v367 = vld [vmem:[%s10 + $0x48] sm:$0xff]
    %v368 = vld [vmem:[%s10 + $0x50] sm:$0xff]
    %v369 = vld [vmem:[%s10 + $0x58] sm:$0xff]
    %v370 = vld [vmem:[%s10 + $0x60] sm:$0xff]
    %v371 = vld [vmem:[%s10 + $0x68] sm:$0xff]
    %v372 = vld [vmem:[%s10 + $0x70] sm:$0xff]
    %v373 = vld [vmem:[%s10 + $0x78] sm:$0xff]
    %v375 = vlaneseq
    %v376 = vshrl.u32 %v375, 7
    %v377 = vsub.s32 0, %v376
    %v378 = vrot.slane %v357, %v377
    %v380 = vmul.f32 %v358, %v378
    %v381 = vmul.f32 %v359, %v378
    %v382 = vmul.f32 %v360, %v378
    %v383 = vmul.f32 %v361, %v378
    %v384 = vmul.f32 %v362, %v378
    %v385 = vmul.f32 %v363, %v378
    %v386 = vmul.f32 %v364, %v378
    %v387 = vmul.f32 %v365, %v378
    %v388 = vmul.f32 %v366, %v378
    %v389 = vmul.f32 %v367, %v378
    %v390 = vmul.f32 %v368, %v378
    %v391 = vmul.f32 %v369, %v378
    %v392 = vmul.f32 %v370, %v378
    %v393 = vmul.f32 %v371, %v378
    %v394 = vmul.f32 %v372, %v378
    %v395 = vmul.f32 %v373, %v378
    %v396 = vld [vmem:[%s11] sm:$0x1]
    %v397 = vmul.f32 %v396, %v357
    %v399 = vlaneseq
    %v400 = vshrl.u32 %v399, 7
    %v401 = vsub.s32 0, %v400
    %v402 = vrot.slane %v397, %v401
    %404 = vmatprep.subr.mxu0 0.0
    %405 = vmatpush1.msra.mxu0 %v395
    %406 = vmatprep.subr.mxu0 0.0
    %407 = vmatpush1.msra.mxu0 %v394
    %408 = vmatprep.subr.mxu0 0.0
    %409 = vmatpush1.msra.mxu0 %v393
    %410 = vmatprep.subr.mxu0 0.0
    %411 = vmatpush1.msra.mxu0 %v392
    %412 = vmatprep.subr.mxu0 0.0
    %413 = vmatpush1.msra.mxu0 %v391
    %414 = vmatprep.subr.mxu0 0.0
    %415 = vmatpush1.msra.mxu0 %v390
    %416 = vmatprep.subr.mxu0 0.0
    %417 = vmatpush1.msra.mxu0 %v389
    %418 = vmatprep.subr.mxu0 0.0
    %419 = vmatpush1.msra.mxu0 %v388
    %420 = vmatprep.subr.mxu0 0.0
    %421 = vmatpush1.msra.mxu0 %v387
    %422 = vmatprep.subr.mxu0 0.0
    %423 = vmatpush1.msra.mxu0 %v386
    %424 = vmatprep.subr.mxu0 0.0
    %425 = vmatpush1.msra.mxu0 %v385
    %426 = vmatprep.subr.mxu0 0.0
    %427 = vmatpush1.msra.mxu0 %v384
    %428 = vmatprep.subr.mxu0 0.0
    %429 = vmatpush1.msra.mxu0 %v383
    %430 = vmatprep.subr.mxu0 0.0
    %431 = vmatpush1.msra.mxu0 %v382
    %432 = vmatprep.subr.mxu0 0.0
    %433 = vmatpush1.msra.mxu0 %v381
    %434 = vmatprep.subr.mxu0 0.0
    %435 = vmatpush1.msra.mxu0 %v380
    %436 = vmatprep.subr.mxu0 0.0
    %437 = vmatpush2.msra.mxu0 0.0
    %438 = vmatprep.subr.mxu0 0.0
    %439 = vmatpush2.msra.mxu0 0.0
    %440 = vmatprep.subr.mxu0 0.0
    %441 = vmatpush2.msra.mxu0 0.0
    %442 = vmatprep.subr.mxu0 0.0
    %443 = vmatpush2.msra.mxu0 0.0
    %444 = vmatprep.subr.mxu0 0.0
    %445 = vmatpush2.msra.mxu0 0.0
    %446 = vmatprep.subr.mxu0 0.0
    %447 = vmatpush2.msra.mxu0 0.0
    %448 = vmatprep.subr.mxu0 0.0
    %449 = vmatpush2.msra.mxu0 0.0
    %450 = vmatprep.subr.mxu0 0.0
    %451 = vmatpush2.msra.mxu0 0.0
    %452 = vmatprep.subr.mxu0 0.0
    %453 = vmatpush2.msra.mxu0 0.0
    %454 = vmatprep.subr.mxu0 0.0
    %455 = vmatpush2.msra.mxu0 0.0
    %456 = vmatprep.subr.mxu0 0.0
    %457 = vmatpush2.msra.mxu0 0.0
    %458 = vmatprep.subr.mxu0 0.0
    %459 = vmatpush2.msra.mxu0 0.0
    %460 = vmatprep.subr.mxu0 0.0
    %461 = vmatpush2.msra.mxu0 0.0
    %462 = vmatprep.subr.mxu0 0.0
    %463 = vmatpush2.msra.mxu0 0.0
    %464 = vmatprep.subr.mxu0 0.0
    %465 = vmatpush2.msra.mxu0 0.0
    %466 = vmatprep.subr.mxu0 0.0
    %467 = vmatpush2.msra.mxu0 0.0
    %468 = vmatprep.mubr.f32.mxu0 0.0
    %469 = vmatmul.mubr.f32.gmra.mxu0 %v353
    %v470 = vpop.f32.mrf.mxu0
    %v471 = vadd.f32 %v402, %v470
    %v472 = vpop.f32.mrf.mxu0
    %473 = vdwg.mxu0
    %vm474 = vcmp.gt.f32.partialorder %v471, 20.0
    %v475 = vmul.f32 %v471, 1.442695
    %v476 = vpow.pop %v475
    %v477 = vadd.f32 %v476, 1.0
    %v478 = vlog2.pop %v477
    %v479 = vmul.f32 %v478, 0.6931472
    %v480 = vmul.f32 -0.5, %v476
    %v481 = vadd.f32 %v480, 1.0
    %v482 = vmul.f32 %v481, %v476
    %v483 = vand.u32 2147483647, %v476
    %vm484 = vcmp.lt.f32.partialorder %v483, 0.0004427343
    %v485 = vsel %vm484, %v482, %v479
    %v486 = vsel %vm474, %v471, %v485
    %v487 = vld [vmem:[%s16] sm:$0x1]
    %v488 = vmul.f32 %v487, %v82
    %v489 = vld [vmem:[%s17] sm:$0x1]
    %v490 = vadd.f32 %v488, %v489
    %v491 = vld [vmem:[#allocation3] sm:$0xff]
    %v492 = vld [vmem:[#allocation3 + $0x8] sm:$0xff]
    %v493 = vld [vmem:[#allocation3 + $0x10] sm:$0xff]
    %v494 = vld [vmem:[#allocation3 + $0x18] sm:$0xff]
    %v495 = vld [vmem:[#allocation3 + $0x20] sm:$0xff]
    %v496 = vld [vmem:[#allocation3 + $0x28] sm:$0xff]
    %v497 = vld [vmem:[#allocation3 + $0x30] sm:$0xff]
    %v498 = vld [vmem:[#allocation3 + $0x38] sm:$0xff]
    %v499 = vld [vmem:[#allocation3 + $0x40] sm:$0xff]
    %v500 = vld [vmem:[#allocation3 + $0x48] sm:$0xff]
    %v501 = vld [vmem:[#allocation3 + $0x50] sm:$0xff]
    %v502 = vld [vmem:[#allocation3 + $0x58] sm:$0xff]
    %v503 = vld [vmem:[#allocation3 + $0x60] sm:$0xff]
    %v504 = vld [vmem:[#allocation3 + $0x68] sm:$0xff]
    %v505 = vld [vmem:[#allocation3 + $0x70] sm:$0xff]
    %v506 = vld [vmem:[#allocation3 + $0x78] sm:$0xff]
    %v508 = vlaneseq
    %v509 = vshrl.u32 %v508, 7
    %v510 = vsub.s32 0, %v509
    %v511 = vrot.slane %v490, %v510
    %v513 = vmul.f32 %v491, %v511
    %v514 = vmul.f32 %v492, %v511
    %v515 = vmul.f32 %v493, %v511
    %v516 = vmul.f32 %v494, %v511
    %v517 = vmul.f32 %v495, %v511
    %v518 = vmul.f32 %v496, %v511
    %v519 = vmul.f32 %v497, %v511
    %v520 = vmul.f32 %v498, %v511
    %v521 = vmul.f32 %v499, %v511
    %v522 = vmul.f32 %v500, %v511
    %v523 = vmul.f32 %v501, %v511
    %v524 = vmul.f32 %v502, %v511
    %v525 = vmul.f32 %v503, %v511
    %v526 = vmul.f32 %v504, %v511
    %v527 = vmul.f32 %v505, %v511
    %v528 = vmul.f32 %v506, %v511
    %v529 = vld [vmem:[%s15] sm:$0x1]
    %v530 = vmul.f32 %v529, %v490
    %v532 = vlaneseq
    %v533 = vshrl.u32 %v532, 7
    %v534 = vsub.s32 0, %v533
    %v535 = vrot.slane %v530, %v534
    %537 = vmatprep.subr.mxu0 0.0
    %538 = vmatpush1.msra.mxu0 %v528
    %539 = vmatprep.subr.mxu0 0.0
    %540 = vmatpush1.msra.mxu0 %v527
    %541 = vmatprep.subr.mxu0 0.0
    %542 = vmatpush1.msra.mxu0 %v526
    %543 = vmatprep.subr.mxu0 0.0
    %544 = vmatpush1.msra.mxu0 %v525
    %545 = vmatprep.subr.mxu0 0.0
    %546 = vmatpush1.msra.mxu0 %v524
    %547 = vmatprep.subr.mxu0 0.0
    %548 = vmatpush1.msra.mxu0 %v523
    %549 = vmatprep.subr.mxu0 0.0
    %550 = vmatpush1.msra.mxu0 %v522
    %551 = vmatprep.subr.mxu0 0.0
    %552 = vmatpush1.msra.mxu0 %v521
    %553 = vmatprep.subr.mxu0 0.0
    %554 = vmatpush1.msra.mxu0 %v520
    %555 = vmatprep.subr.mxu0 0.0
    %556 = vmatpush1.msra.mxu0 %v519
    %557 = vmatprep.subr.mxu0 0.0
    %558 = vmatpush1.msra.mxu0 %v518
    %559 = vmatprep.subr.mxu0 0.0
    %560 = vmatpush1.msra.mxu0 %v517
    %561 = vmatprep.subr.mxu0 0.0
    %562 = vmatpush1.msra.mxu0 %v516
    %563 = vmatprep.subr.mxu0 0.0
    %564 = vmatpush1.msra.mxu0 %v515
    %565 = vmatprep.subr.mxu0 0.0
    %566 = vmatpush1.msra.mxu0 %v514
    %567 = vmatprep.subr.mxu0 0.0
    %568 = vmatpush1.msra.mxu0 %v513
    %569 = vmatprep.subr.mxu0 0.0
    %570 = vmatpush2.msra.mxu0 0.0
    %571 = vmatprep.subr.mxu0 0.0
    %572 = vmatpush2.msra.mxu0 0.0
    %573 = vmatprep.subr.mxu0 0.0
    %574 = vmatpush2.msra.mxu0 0.0
    %575 = vmatprep.subr.mxu0 0.0
    %576 = vmatpush2.msra.mxu0 0.0
    %577 = vmatprep.subr.mxu0 0.0
    %578 = vmatpush2.msra.mxu0 0.0
    %579 = vmatprep.subr.mxu0 0.0
    %580 = vmatpush2.msra.mxu0 0.0
    %581 = vmatprep.subr.mxu0 0.0
    %582 = vmatpush2.msra.mxu0 0.0
    %583 = vmatprep.subr.mxu0 0.0
    %584 = vmatpush2.msra.mxu0 0.0
    %585 = vmatprep.subr.mxu0 0.0
    %586 = vmatpush2.msra.mxu0 0.0
    %587 = vmatprep.subr.mxu0 0.0
    %588 = vmatpush2.msra.mxu0 0.0
    %589 = vmatprep.subr.mxu0 0.0
    %590 = vmatpush2.msra.mxu0 0.0
    %591 = vmatprep.subr.mxu0 0.0
    %592 = vmatpush2.msra.mxu0 0.0
    %593 = vmatprep.subr.mxu0 0.0
    %594 = vmatpush2.msra.mxu0 0.0
    %595 = vmatprep.subr.mxu0 0.0
    %596 = vmatpush2.msra.mxu0 0.0
    %597 = vmatprep.subr.mxu0 0.0
    %598 = vmatpush2.msra.mxu0 0.0
    %599 = vmatprep.subr.mxu0 0.0
    %600 = vmatpush2.msra.mxu0 0.0
    %601 = vmatprep.mubr.f32.mxu0 0.0
    %602 = vmatmul.mubr.f32.gmra.mxu0 %v486
    %v603 = vpop.f32.mrf.mxu0
    %v604 = vadd.f32 %v535, %v603
    %v605 = vpop.f32.mrf.mxu0
    %606 = vdwg.mxu0
    %vm607 = vcmp.gt.f32.partialorder %v604, 20.0
    %v608 = vmul.f32 %v604, 1.442695
    %v609 = vpow.pop %v608
    %v610 = vadd.f32 %v609, 1.0
    %v611 = vlog2.pop %v610
    %v612 = vmul.f32 %v611, 0.6931472
    %v613 = vmul.f32 -0.5, %v609
    %v614 = vadd.f32 %v613, 1.0
    %v615 = vmul.f32 %v614, %v609
    %v616 = vand.u32 2147483647, %v609
    %vm617 = vcmp.lt.f32.partialorder %v616, 0.0004427343
    %v618 = vsel %vm617, %v615, %v612
    %v619 = vsel %vm607, %v604, %v618
    %v620 = vld [vmem:[%s18] sm:$0xff]
    %v621 = vld [vmem:[%s18 + $0x8] sm:$0xff]
    %v622 = vld [vmem:[%s18 + $0x10] sm:$0xff]
    %v623 = vld [vmem:[%s18 + $0x18] sm:$0xff]
    %v624 = vld [vmem:[%s18 + $0x20] sm:$0xff]
    %v625 = vld [vmem:[%s18 + $0x28] sm:$0xff]
    %v626 = vld [vmem:[%s18 + $0x30] sm:$0xff]
    %v627 = vld [vmem:[%s18 + $0x38] sm:$0xff]
    %v628 = vld [vmem:[%s18 + $0x40] sm:$0xff]
    %v629 = vld [vmem:[%s18 + $0x48] sm:$0xff]
    %v630 = vld [vmem:[%s18 + $0x50] sm:$0xff]
    %v631 = vld [vmem:[%s18 + $0x58] sm:$0xff]
    %v632 = vld [vmem:[%s18 + $0x60] sm:$0xff]
    %v633 = vld [vmem:[%s18 + $0x68] sm:$0xff]
    %v634 = vld [vmem:[%s18 + $0x70] sm:$0xff]
    %v635 = vld [vmem:[%s18 + $0x78] sm:$0xff]
    %v636 = vld [vmem:[%s19] sm:$0x1]
    %v638 = vlaneseq
    %v639 = vshrl.u32 %v638, 7
    %v640 = vsub.s32 0, %v639
    %v641 = vrot.slane %v636, %v640
    %643 = vmatprep.subr.mxu0 0.0
    %644 = vmatpush1.msra.mxu0 %v635
    %645 = vmatprep.subr.mxu0 0.0
    %646 = vmatpush1.msra.mxu0 %v634
    %647 = vmatprep.subr.mxu0 0.0
    %648 = vmatpush1.msra.mxu0 %v633
    %649 = vmatprep.subr.mxu0 0.0
    %650 = vmatpush1.msra.mxu0 %v632
    %651 = vmatprep.subr.mxu0 0.0
    %652 = vmatpush1.msra.mxu0 %v631
    %653 = vmatprep.subr.mxu0 0.0
    %654 = vmatpush1.msra.mxu0 %v630
    %655 = vmatprep.subr.mxu0 0.0
    %656 = vmatpush1.msra.mxu0 %v629
    %657 = vmatprep.subr.mxu0 0.0
    %658 = vmatpush1.msra.mxu0 %v628
    %659 = vmatprep.subr.mxu0 0.0
    %660 = vmatpush1.msra.mxu0 %v627
    %661 = vmatprep.subr.mxu0 0.0
    %662 = vmatpush1.msra.mxu0 %v626
    %663 = vmatprep.subr.mxu0 0.0
    %664 = vmatpush1.msra.mxu0 %v625
    %665 = vmatprep.subr.mxu0 0.0
    %666 = vmatpush1.msra.mxu0 %v624
    %667 = vmatprep.subr.mxu0 0.0
    %668 = vmatpush1.msra.mxu0 %v623
    %669 = vmatprep.subr.mxu0 0.0
    %670 = vmatpush1.msra.mxu0 %v622
    %671 = vmatprep.subr.mxu0 0.0
    %672 = vmatpush1.msra.mxu0 %v621
    %673 = vmatprep.subr.mxu0 0.0
    %674 = vmatpush1.msra.mxu0 %v620
    %675 = vmatprep.subr.mxu0 0.0
    %676 = vmatpush2.msra.mxu0 0.0
    %677 = vmatprep.subr.mxu0 0.0
    %678 = vmatpush2.msra.mxu0 0.0
    %679 = vmatprep.subr.mxu0 0.0
    %680 = vmatpush2.msra.mxu0 0.0
    %681 = vmatprep.subr.mxu0 0.0
    %682 = vmatpush2.msra.mxu0 0.0
    %683 = vmatprep.subr.mxu0 0.0
    %684 = vmatpush2.msra.mxu0 0.0
    %685 = vmatprep.subr.mxu0 0.0
    %686 = vmatpush2.msra.mxu0 0.0
    %687 = vmatprep.subr.mxu0 0.0
    %688 = vmatpush2.msra.mxu0 0.0
    %689 = vmatprep.subr.mxu0 0.0
    %690 = vmatpush2.msra.mxu0 0.0
    %691 = vmatprep.subr.mxu0 0.0
    %692 = vmatpush2.msra.mxu0 0.0
    %693 = vmatprep.subr.mxu0 0.0
    %694 = vmatpush2.msra.mxu0 0.0
    %695 = vmatprep.subr.mxu0 0.0
    %696 = vmatpush2.msra.mxu0 0.0
    %697 = vmatprep.subr.mxu0 0.0
    %698 = vmatpush2.msra.mxu0 0.0
    %699 = vmatprep.subr.mxu0 0.0
    %700 = vmatpush2.msra.mxu0 0.0
    %701 = vmatprep.subr.mxu0 0.0
    %702 = vmatpush2.msra.mxu0 0.0
    %703 = vmatprep.subr.mxu0 0.0
    %704 = vmatpush2.msra.mxu0 0.0
    %705 = vmatprep.subr.mxu0 0.0
    %706 = vmatpush2.msra.mxu0 0.0
    %707 = vmatprep.mubr.f32.mxu0 0.0
    %708 = vmatmul.mubr.f32.gmra.mxu0 %v619
    %v709 = vpop.f32.mrf.mxu0
    %v710 = vadd.f32 %v641, %v709
    %v711 = vpop.f32.mrf.mxu0
    %712 = vdwg.mxu0
    %713 = vst.msk [vmem:[%s20] sm:$0xff] %vm100, %v710
    // Predicated region
    $region86: #{noise_estimator_forward.1} parent=1 // pred_check
      _
    $region87: #{noise_estimator_forward.1} parent=1 // pred_check_branch
      %715 = sbr.rel (0) target = $region89
    $region88: #{noise_estimator_forward.1} parent=1 // pred_region
      _
    $region89: #{noise_estimator_forward.1} parent=1 // pred_fallthru
      _
    // Predicated region
    $region90: #{noise_estimator_forward.1} parent=1 // pred_check
      _
    $region91: #{noise_estimator_forward.1} parent=1 // pred_check_branch
      %717 = sbr.rel (0) target = $region93
    $region92: #{noise_estimator_forward.1} parent=1 // pred_region
      _
    $region93: #{noise_estimator_forward.1} parent=1 // pred_fallthru
      _
    %718 = vsyncpa [#allocation4], 1

</llo_original>
